<compile_context>
chip_gen: v7x
topology: tpu7x:2x2x1
jax: 0.10.0
libtpu: 0.0.40
codegen_flags: <defaults>
</compile_context>

<pallas_src>
import math
import functools

import jax
import jax.numpy as jnp
from jax import lax
from jax.experimental import pallas as pl
from jax.experimental.pallas import tpu as pltpu


# ---------------------------------------------------------------------------
# Stage 1: grouped-head QKV projection (one wide matmul per q/k/v per step)
# ---------------------------------------------------------------------------
def _qkv_proj_kernel(x_ref, wq_ref, wk_ref, wv_ref, q_ref, k_ref, v_ref, *, G, hd):
    # x_ref : (1, tq, C)        current (batch, T-tile)
    # w*_ref: (1, C, G*hd)      weight slab for this head group (wq pre-scaled)
    # out   : (1, G, tq, hd)    head-major q / k / v for the G heads of the group
    x = x_ref[0]                                           # native dtype -> MXU
    qa = jnp.dot(x, wq_ref[0], preferred_element_type=jnp.float32)   # (tq, G*hd)
    ka = jnp.dot(x, wk_ref[0], preferred_element_type=jnp.float32)
    va = jnp.dot(x, wv_ref[0], preferred_element_type=jnp.float32)
    for g in range(G):
        sl = slice(g * hd, (g + 1) * hd)
        q_ref[0, g] = qa[:, sl].astype(q_ref.dtype)
        k_ref[0, g] = ka[:, sl].astype(k_ref.dtype)
        v_ref[0, g] = va[:, sl].astype(v_ref.dtype)


# ---------------------------------------------------------------------------
# Stage 2: flash attention (online softmax) + fused output projection,
#          G heads per grid step, causal DMA clamp handled in the index_map.
# ---------------------------------------------------------------------------
def _flash_attn_proj_kernel(q_ref, k_ref, v_ref, wp_ref, o_ref,
                            m_s, l_s, acc_s, out_s, *, G, hd, tq, tkv):
    # grid = (B, n_q, n_head_groups, n_kv); output block constant over the two
    # inner ("arbitrary") axes.
    qi = pl.program_id(1)
    hg = pl.program_id(2)
    kv = pl.program_id(3)
    n_hg = pl.num_programs(2)
    n_kv = pl.num_programs(3)

    # Zero the cross-head output accumulator once per (batch, q-tile) epoch.
    @pl.when(jnp.logical_and(hg == 0, kv == 0))
    def _():
        out_s[...] = jnp.zeros_like(out_s)

    # Reset per-head online-softmax state at the start of each group's KV sweep.
    @pl.when(kv == 0)
    def _():
        m_s[...] = jnp.full_like(m_s, -jnp.inf)
        l_s[...] = jnp.zeros_like(l_s)
        acc_s[...] = jnp.zeros_like(acc_s)

    q_start = qi * tq
    kv_start = kv * tkv

    def update(masked):
        for g in range(G):
            q = q_ref[0, g]                    # (tq, hd), scale folded into Wq
            k = k_ref[0, g]                    # (tkv, hd)
            v = v_ref[0, g]                    # (tkv, hd)

            # Scores: contract the head dim directly (no transposed copy of k).
            s = lax.dot_general(q, k, (((1,), (1,)), ((), ())),
                                preferred_element_type=jnp.float32)  # (tq, tkv)
            if masked:
                row = q_start + lax.broadcasted_iota(jnp.int32, (tq, tkv), 0)
                col = kv_start + lax.broadcasted_iota(jnp.int32, (tq, tkv), 1)
                # -1e30 (not -inf): the kv=0 tile always has >=1 visible column
                # per row, so no (inf - inf) NaN can appear later.
                s = jnp.where(col <= row, s, jnp.float32(-1e30))

            m_prev = m_s[g]                                         # (tq, 1)
            m_new = jnp.maximum(m_prev, jnp.max(s, axis=-1, keepdims=True))
            alpha = jnp.exp(m_prev - m_new)
            p = jnp.exp(s - m_new)
            l_s[g] = alpha * l_s[g] + jnp.sum(p, axis=-1, keepdims=True)
            acc_s[g] = alpha * acc_s[g] + jnp.dot(
                p.astype(v.dtype), v, preferred_element_type=jnp.float32)
            m_s[g] = m_new

    # Causal tile classification (above-diagonal tiles do nothing at all; their
    # DMA was already suppressed by the clamped index_map).
    fully_visible = (kv_start + (tkv - 1)) <= q_start
    straddles = jnp.logical_and(kv_start <= q_start + (tq - 1),
                                (kv_start + (tkv - 1)) > q_start)

    @pl.when(fully_visible)
    def _():
        update(False)          # interior tile: no mask construction

    @pl.when(straddles)
    def _():
        update(True)           # diagonal tile: build and apply the causal mask

    # End of this group's KV sweep: normalize all G heads, concatenate them and
    # fold in the output projection with one wide-K matmul.
    @pl.when(kv == n_kv - 1)
    def _():
        ys = []
        for g in range(G):
            inv_l = pl.reciprocal(l_s[g], approx=True)      # EUP slot, ~free
            ys.append((acc_s[g] * inv_l).astype(wp_ref.dtype))
        y_cat = ys[0] if G == 1 else jnp.concatenate(ys, axis=-1)   # (tq, G*hd)
        out_s[...] += jnp.dot(y_cat, wp_ref[0],
                              preferred_element_type=jnp.float32)

    # Last head group: single lane-dense store of the (tq, C) output block.
    @pl.when(jnp.logical_and(hg == n_hg - 1, kv == n_kv - 1))
    def _():
        o_ref[0] = out_s[...].astype(o_ref.dtype)


# ---------------------------------------------------------------------------
# Wrapper
# ---------------------------------------------------------------------------
def _pick_tile(n, pref):
    """Largest multiple-of-8 divisor of n that is <= pref (or n itself)."""
    if n <= pref:
        return n
    if n % 8 != 0:
        # Must fall back to the full dim to satisfy the (8,128) block rule.
        return n
    best = 8
    for t in range(8, pref + 1, 8):
        if n % t == 0:
            best = t
    return best


def _largest_divisor_leq(n, bound):
    bound = max(1, min(n, bound))
    best = 1
    for d in range(1, bound + 1):
        if n % d == 0:
            best = d
    return best


def efficient_causal_forward(x, w_cattn, w_cproj, n_heads, *,
                             q_tile=256, kv_tile=512, heads_per_step=None):
    """Forward pass of EfficientCausal.

    x       : (B, T, C)
    w_cattn : (3C, C)  torch nn.Linear(embed, 3*embed, bias=False).weight
    w_cproj : (C, C)   torch nn.Linear(embed, embed, bias=False).weight
    """
    B, T, C = x.shape
    H = n_heads
    hd = C // H
    assert H * hd == C, "embed_size must be divisible by n_heads"

    tq = _pick_tile(T, q_tile)
    tkv = _pick_tile(T, kv_tile)
    n_q = T // tq
    n_kv = T // tkv

    # Heads per grid step: widest group with G*hd <= 512 that divides H.
    if heads_per_step is None:
        heads_per_step = _largest_divisor_leq(H, max(1, 512 // max(hd, 1)))
    G = _largest_divisor_leq(H, heads_per_step)
    HG = H // G

    # ---- Layout plumbing (once, outside the kernels) -----------------------
    #  - transpose Linear weights to (in, out)
    #  - group heads into (HG, C, G*hd) slabs (columns are already head-major)
    #  - fold the 1/sqrt(hd) attention scale into the Q weights
    scale = 1.0 / math.sqrt(hd)
    w_t = w_cattn.T                                                  # (C, 3C)

    def _group_w(w2d):
        return jnp.transpose(w2d.reshape(C, HG, G * hd), (1, 0, 2)).astype(x.dtype)

    wq_g = _group_w(w_t[:, :C] * scale)                              # (HG, C, G*hd)
    wk_g = _group_w(w_t[:, C:2 * C])
    wv_g = _group_w(w_t[:, 2 * C:])
    wp_g = w_cproj.T.reshape(HG, G * hd, C).astype(x.dtype)          # (HG, G*hd, C)

    cparams1 = pltpu.CompilerParams(
        dimension_semantics=("parallel", "parallel", "parallel"),
        vmem_limit_bytes=64 * 1024 * 1024)
    cparams2 = pltpu.CompilerParams(
        dimension_semantics=("parallel", "parallel", "arbitrary", "arbitrary"),
        vmem_limit_bytes=64 * 1024 * 1024)

    # ---- Stage 1: grouped-head QKV projection ------------------------------
    # Grid order (B, HG, n_q): the per-group weight block index is constant
    # across the inner q sweep -> fetched once per group; x is re-streamed only
    # HG (= H/G) times instead of H times.
    qkv_kernel = functools.partial(_qkv_proj_kernel, G=G, hd=hd)
    q, k, v = pl.pallas_call(
        qkv_kernel,
        out_shape=(jax.ShapeDtypeStruct((B, H, T, hd), x.dtype),
                   jax.ShapeDtypeStruct((B, H, T, hd), x.dtype),
                   jax.ShapeDtypeStruct((B, H, T, hd), x.dtype)),
        grid_spec=pltpu.PrefetchScalarGridSpec(
            num_scalar_prefetch=0,
            grid=(B, HG, n_q),
            in_specs=[
                pl.BlockSpec((1, tq, C), lambda b, hg, t: (b, t, 0)),
                pl.BlockSpec((1, C, G * hd), lambda b, hg, t: (hg, 0, 0)),
                pl.BlockSpec((1, C, G * hd), lambda b, hg, t: (hg, 0, 0)),
                pl.BlockSpec((1, C, G * hd), lambda b, hg, t: (hg, 0, 0)),
            ],
            out_specs=[
                pl.BlockSpec((1, G, tq, hd), lambda b, hg, t: (b, hg, t, 0)),
                pl.BlockSpec((1, G, tq, hd), lambda b, hg, t: (b, hg, t, 0)),
                pl.BlockSpec((1, G, tq, hd), lambda b, hg, t: (b, hg, t, 0)),
            ],
        ),
        compiler_params=cparams1,
    )(x, wq_g, wk_g, wv_g)

    # ---- Stage 2: flash attention + output projection ----------------------
    # K/V index_map clamped to the causal bound: above-diagonal kv steps map to
    # the previously fetched block -> no DMA is issued for them.
    def _kv_index(b, qi, hg, kv):
        kv_max = (qi * tq + (tq - 1)) // tkv
        return (b, hg, jnp.minimum(kv, kv_max), 0)

    attn_kernel = functools.partial(_flash_attn_proj_kernel,
                                    G=G, hd=hd, tq=tq, tkv=tkv)
    out = pl.pallas_call(
        attn_kernel,
        out_shape=jax.ShapeDtypeStruct((B, T, C), x.dtype),
        grid_spec=pltpu.PrefetchScalarGridSpec(
            num_scalar_prefetch=0,
            grid=(B, n_q, HG, n_kv),
            in_specs=[
                pl.BlockSpec((1, G, tq, hd), lambda b, qi, hg, kv: (b, hg, qi, 0)),
                pl.BlockSpec((1, G, tkv, hd), _kv_index),
                pl.BlockSpec((1, G, tkv, hd), _kv_index),
                pl.BlockSpec((1, G * hd, C), lambda b, qi, hg, kv: (hg, 0, 0)),
            ],
            out_specs=pl.BlockSpec((1, tq, C), lambda b, qi, hg, kv: (b, qi, 0)),
            scratch_shapes=[
                pltpu.VMEM((G, tq, 1), jnp.float32),    # m   (running max)
                pltpu.VMEM((G, tq, 1), jnp.float32),    # l   (running denom)
                pltpu.VMEM((G, tq, hd), jnp.float32),   # per-head attention acc
                pltpu.VMEM((tq, C), jnp.float32),       # cross-group output acc
            ],
        ),
        compiler_params=cparams2,
    )(q, k, v, wp_g)
    return out


# ---------------------------------------------------------------------------
# Pure-JAX reference (matches the PyTorch module semantics, dropout=0.0)
# ---------------------------------------------------------------------------
def _reference_forward(x, w_cattn, w_cproj, n_heads):
    B, T, C = x.shape
    hd = C // n_heads
    qkv = x @ w_cattn.T
    q, k, v = jnp.split(qkv, 3, axis=-1)
    q = q.reshape(B, T, n_heads, hd).transpose(0, 2, 1, 3)
    k = k.reshape(B, T, n_heads, hd).transpose(0, 2, 1, 3)
    v = v.reshape(B, T, n_heads, hd).transpose(0, 2, 1, 3)
    att = jnp.einsum("bhqd,bhkd->bhqk", q, k) / math.sqrt(hd)
    mask = jnp.tril(jnp.ones((T, T), dtype=bool))
    att = jnp.where(mask[None, None], att, -jnp.inf)
    att = jax.nn.softmax(att, axis=-1)
    y = jnp.einsum("bhqk,bhkd->bhqd", att, v)
    y = y.transpose(0, 2, 1, 3).reshape(B, T, C)
    return y @ w_cproj.T


if __name__ == "__main__":
    # Small shapes consistent with the module.
    embed_size = 32
    n_heads = 4
    block_size = 16          # sequence length T
    B, T, C = 2, block_size, embed_size

    key = jax.random.PRNGKey(0)
    kx, kqkv, kproj = jax.random.split(key, 3)

    x = jax.random.normal(kx, (B, T, C), dtype=jnp.float32)

    # nn.Linear weights in torch (out, in) layout, bias=False.
    bound = 1.0 / math.sqrt(embed_size)
    w_cattn = jax.random.uniform(kqkv, (3 * C, C), jnp.float32, -bound, bound)
    w_cproj = jax.random.uniform(kproj, (C, C), jnp.float32, -bound, bound)

    y_ref = _reference_forward(x, w_cattn, w_cproj, n_heads)

    # Single-tile path (tq = tkv = T, all heads in one group).
    y1 = jax.block_until_ready(
        efficient_causal_forward(x, w_cattn, w_cproj, n_heads))
    assert jnp.allclose(y1, y_ref, atol=5e-3, rtol=5e-3), \
        "mismatch vs reference (single tile)"

    # Multi-tile path: 2 q tiles x 2 kv tiles exercises online softmax, the
    # clamped causal DMA skip and masked/unmasked tile paths.
    y2 = jax.block_until_ready(
        efficient_causal_forward(x, w_cattn, w_cproj, n_heads,
                                 q_tile=8, kv_tile=8))
    assert jnp.allclose(y2, y_ref, atol=5e-3, rtol=5e-3), \
        "mismatch vs reference (tiled flash path)"

    # Two head groups: exercises the cross-group output accumulation and the
    # grouped Stage-1 weight slabs.
    y3 = jax.block_until_ready(
        efficient_causal_forward(x, w_cattn, w_cproj, n_heads,
                                 q_tile=8, kv_tile=8, heads_per_step=2))
    assert jnp.allclose(y3, y_ref, atol=5e-3, rtol=5e-3), \
        "mismatch vs reference (grouped-head path)"

    print("KERNEL_OK")
</pallas_src>

<mosaic_0001>
module attributes {stable_mosaic.version = 11 : i64} {
  func.func @_qkv_proj_kernel(%arg0: i32, %arg1: i32, %arg2: i32, %arg3: memref<1x16x32xf32, #tpu.memory_space<vmem>>, %arg4: memref<1x32x32xf32, #tpu.memory_space<vmem>>, %arg5: memref<1x32x32xf32, #tpu.memory_space<vmem>>, %arg6: memref<1x32x32xf32, #tpu.memory_space<vmem>>, %arg7: memref<1x4x16x8xf32, #tpu.memory_space<vmem>>, %arg8: memref<1x4x16x8xf32, #tpu.memory_space<vmem>>, %arg9: memref<1x4x16x8xf32, #tpu.memory_space<vmem>>) attributes {dimension_semantics = [#tpu.dimension_semantics<parallel>, #tpu.dimension_semantics<parallel>, #tpu.dimension_semantics<parallel>], iteration_bounds = array<i64: 2, 1, 1>, scalar_prefetch = 0 : i64, scratch_operands = 0 : i64, tpu.core_type = #tpu.core_type<tc>, window_params = [{transform_indices = @transform_0, window_bounds = array<i64: 1, 16, 32>}, {transform_indices = @transform_1, window_bounds = array<i64: 1, 32, 32>}, {transform_indices = @transform_2, window_bounds = array<i64: 1, 32, 32>}, {transform_indices = @transform_3, window_bounds = array<i64: 1, 32, 32>}, {transform_indices = @transform_4, window_bounds = array<i64: 1, 4, 16, 8>}, {transform_indices = @transform_5, window_bounds = array<i64: 1, 4, 16, 8>}, {transform_indices = @transform_6, window_bounds = array<i64: 1, 4, 16, 8>}]} {
    %c0 = arith.constant 0 : index
    %c0_0 = arith.constant 0 : index
    %c0_1 = arith.constant 0 : index
    %0 = vector.load %arg3[%c0, %c0_0, %c0_1] : memref<1x16x32xf32, #tpu.memory_space<vmem>>, vector<1x16x32xf32>
    %1 = vector.shape_cast %0 : vector<1x16x32xf32> to vector<16x32xf32>
    %c0_2 = arith.constant 0 : index
    %c0_3 = arith.constant 0 : index
    %c0_4 = arith.constant 0 : index
    %2 = vector.load %arg4[%c0_2, %c0_3, %c0_4] : memref<1x32x32xf32, #tpu.memory_space<vmem>>, vector<1x32x32xf32>
    %3 = vector.shape_cast %2 : vector<1x32x32xf32> to vector<32x32xf32>
    %cst = arith.constant dense<0.000000e+00> : vector<16x32xf32>
    %4 = tpu.matmul %1, %3, %cst {dimension_numbers = #tpu.dot_dimension_numbers<[1], [0], [0], [1], [0, 0, 1, 1], [], []>} : vector<16x32xf32>, vector<32x32xf32>, vector<16x32xf32> -> vector<16x32xf32>
    %c0_5 = arith.constant 0 : index
    %c0_6 = arith.constant 0 : index
    %c0_7 = arith.constant 0 : index
    %5 = vector.load %arg5[%c0_5, %c0_6, %c0_7] : memref<1x32x32xf32, #tpu.memory_space<vmem>>, vector<1x32x32xf32>
    %6 = vector.shape_cast %5 : vector<1x32x32xf32> to vector<32x32xf32>
    %cst_8 = arith.constant dense<0.000000e+00> : vector<16x32xf32>
    %7 = tpu.matmul %1, %6, %cst_8 {dimension_numbers = #tpu.dot_dimension_numbers<[1], [0], [0], [1], [0, 0, 1, 1], [], []>} : vector<16x32xf32>, vector<32x32xf32>, vector<16x32xf32> -> vector<16x32xf32>
    %c0_9 = arith.constant 0 : index
    %c0_10 = arith.constant 0 : index
    %c0_11 = arith.constant 0 : index
    %8 = vector.load %arg6[%c0_9, %c0_10, %c0_11] : memref<1x32x32xf32, #tpu.memory_space<vmem>>, vector<1x32x32xf32>
    %9 = vector.shape_cast %8 : vector<1x32x32xf32> to vector<32x32xf32>
    %cst_12 = arith.constant dense<0.000000e+00> : vector<16x32xf32>
    %10 = tpu.matmul %1, %9, %cst_12 {dimension_numbers = #tpu.dot_dimension_numbers<[1], [0], [0], [1], [0, 0, 1, 1], [], []>} : vector<16x32xf32>, vector<32x32xf32>, vector<16x32xf32> -> vector<16x32xf32>
    %11 = vector.extract_strided_slice %4 {offsets = [0, 0], sizes = [16, 8], strides = [1, 1]} : vector<16x32xf32> to vector<16x8xf32>
    %c0_13 = arith.constant 0 : index
    %c0_14 = arith.constant 0 : index
    %c0_15 = arith.constant 0 : index
    %c0_16 = arith.constant 0 : index
    %12 = vector.load %arg7[%c0_13, %c0_14, %c0_15, %c0_16] : memref<1x4x16x8xf32, #tpu.memory_space<vmem>>, vector<1x1x16x8xf32>
    %13 = vector.shape_cast %12 : vector<1x1x16x8xf32> to vector<16x8xf32>
    %14 = vector.shape_cast %11 : vector<16x8xf32> to vector<1x1x16x8xf32>
    tpu.vector_store %arg7[%c0_13, %c0_14, %c0_15, %c0_16], %14 {strides = array<i32>} : memref<1x4x16x8xf32, #tpu.memory_space<vmem>>, vector<1x1x16x8xf32>,
    %15 = vector.extract_strided_slice %7 {offsets = [0, 0], sizes = [16, 8], strides = [1, 1]} : vector<16x32xf32> to vector<16x8xf32>
    %c0_17 = arith.constant 0 : index
    %c0_18 = arith.constant 0 : index
    %c0_19 = arith.constant 0 : index
    %c0_20 = arith.constant 0 : index
    %16 = vector.load %arg8[%c0_17, %c0_18, %c0_19, %c0_20] : memref<1x4x16x8xf32, #tpu.memory_space<vmem>>, vector<1x1x16x8xf32>
    %17 = vector.shape_cast %16 : vector<1x1x16x8xf32> to vector<16x8xf32>
    %18 = vector.shape_cast %15 : vector<16x8xf32> to vector<1x1x16x8xf32>
    tpu.vector_store %arg8[%c0_17, %c0_18, %c0_19, %c0_20], %18 {strides = array<i32>} : memref<1x4x16x8xf32, #tpu.memory_space<vmem>>, vector<1x1x16x8xf32>,
    %19 = vector.extract_strided_slice %10 {offsets = [0, 0], sizes = [16, 8], strides = [1, 1]} : vector<16x32xf32> to vector<16x8xf32>
    %c0_21 = arith.constant 0 : index
    %c0_22 = arith.constant 0 : index
    %c0_23 = arith.constant 0 : index
    %c0_24 = arith.constant 0 : index
    %20 = vector.load %arg9[%c0_21, %c0_22, %c0_23, %c0_24] : memref<1x4x16x8xf32, #tpu.memory_space<vmem>>, vector<1x1x16x8xf32>
    %21 = vector.shape_cast %20 : vector<1x1x16x8xf32> to vector<16x8xf32>
    %22 = vector.shape_cast %19 : vector<16x8xf32> to vector<1x1x16x8xf32>
    tpu.vector_store %arg9[%c0_21, %c0_22, %c0_23, %c0_24], %22 {strides = array<i32>} : memref<1x4x16x8xf32, #tpu.memory_space<vmem>>, vector<1x1x16x8xf32>,
    %23 = vector.extract_strided_slice %4 {offsets = [0, 8], sizes = [16, 8], strides = [1, 1]} : vector<16x32xf32> to vector<16x8xf32>
    %c0_25 = arith.constant 0 : index
    %c1 = arith.constant 1 : index
    %c0_26 = arith.constant 0 : index
    %c0_27 = arith.constant 0 : index
    %24 = vector.load %arg7[%c0_25, %c1, %c0_26, %c0_27] : memref<1x4x16x8xf32, #tpu.memory_space<vmem>>, vector<1x1x16x8xf32>
    %25 = vector.shape_cast %24 : vector<1x1x16x8xf32> to vector<16x8xf32>
    %26 = vector.shape_cast %23 : vector<16x8xf32> to vector<1x1x16x8xf32>
    tpu.vector_store %arg7[%c0_25, %c1, %c0_26, %c0_27], %26 {strides = array<i32>} : memref<1x4x16x8xf32, #tpu.memory_space<vmem>>, vector<1x1x16x8xf32>,
    %27 = vector.extract_strided_slice %7 {offsets = [0, 8], sizes = [16, 8], strides = [1, 1]} : vector<16x32xf32> to vector<16x8xf32>
    %c0_28 = arith.constant 0 : index
    %c1_29 = arith.constant 1 : index
    %c0_30 = arith.constant 0 : index
    %c0_31 = arith.constant 0 : index
    %28 = vector.load %arg8[%c0_28, %c1_29, %c0_30, %c0_31] : memref<1x4x16x8xf32, #tpu.memory_space<vmem>>, vector<1x1x16x8xf32>
    %29 = vector.shape_cast %28 : vector<1x1x16x8xf32> to vector<16x8xf32>
    %30 = vector.shape_cast %27 : vector<16x8xf32> to vector<1x1x16x8xf32>
    tpu.vector_store %arg8[%c0_28, %c1_29, %c0_30, %c0_31], %30 {strides = array<i32>} : memref<1x4x16x8xf32, #tpu.memory_space<vmem>>, vector<1x1x16x8xf32>,
    %31 = vector.extract_strided_slice %10 {offsets = [0, 8], sizes = [16, 8], strides = [1, 1]} : vector<16x32xf32> to vector<16x8xf32>
    %c0_32 = arith.constant 0 : index
    %c1_33 = arith.constant 1 : index
    %c0_34 = arith.constant 0 : index
    %c0_35 = arith.constant 0 : index
    %32 = vector.load %arg9[%c0_32, %c1_33, %c0_34, %c0_35] : memref<1x4x16x8xf32, #tpu.memory_space<vmem>>, vector<1x1x16x8xf32>
    %33 = vector.shape_cast %32 : vector<1x1x16x8xf32> to vector<16x8xf32>
    %34 = vector.shape_cast %31 : vector<16x8xf32> to vector<1x1x16x8xf32>
    tpu.vector_store %arg9[%c0_32, %c1_33, %c0_34, %c0_35], %34 {strides = array<i32>} : memref<1x4x16x8xf32, #tpu.memory_space<vmem>>, vector<1x1x16x8xf32>,
    %35 = vector.extract_strided_slice %4 {offsets = [0, 16], sizes = [16, 8], strides = [1, 1]} : vector<16x32xf32> to vector<16x8xf32>
    %c0_36 = arith.constant 0 : index
    %c2 = arith.constant 2 : index
    %c0_37 = arith.constant 0 : index
    %c0_38 = arith.constant 0 : index
    %36 = vector.load %arg7[%c0_36, %c2, %c0_37, %c0_38] : memref<1x4x16x8xf32, #tpu.memory_space<vmem>>, vector<1x1x16x8xf32>
    %37 = vector.shape_cast %36 : vector<1x1x16x8xf32> to vector<16x8xf32>
    %38 = vector.shape_cast %35 : vector<16x8xf32> to vector<1x1x16x8xf32>
    tpu.vector_store %arg7[%c0_36, %c2, %c0_37, %c0_38], %38 {strides = array<i32>} : memref<1x4x16x8xf32, #tpu.memory_space<vmem>>, vector<1x1x16x8xf32>,
    %39 = vector.extract_strided_slice %7 {offsets = [0, 16], sizes = [16, 8], strides = [1, 1]} : vector<16x32xf32> to vector<16x8xf32>
    %c0_39 = arith.constant 0 : index
    %c2_40 = arith.constant 2 : index
    %c0_41 = arith.constant 0 : index
    %c0_42 = arith.constant 0 : index
    %40 = vector.load %arg8[%c0_39, %c2_40, %c0_41, %c0_42] : memref<1x4x16x8xf32, #tpu.memory_space<vmem>>, vector<1x1x16x8xf32>
    %41 = vector.shape_cast %40 : vector<1x1x16x8xf32> to vector<16x8xf32>
    %42 = vector.shape_cast %39 : vector<16x8xf32> to vector<1x1x16x8xf32>
    tpu.vector_store %arg8[%c0_39, %c2_40, %c0_41, %c0_42], %42 {strides = array<i32>} : memref<1x4x16x8xf32, #tpu.memory_space<vmem>>, vector<1x1x16x8xf32>,
    %43 = vector.extract_strided_slice %10 {offsets = [0, 16], sizes = [16, 8], strides = [1, 1]} : vector<16x32xf32> to vector<16x8xf32>
    %c0_43 = arith.constant 0 : index
    %c2_44 = arith.constant 2 : index
    %c0_45 = arith.constant 0 : index
    %c0_46 = arith.constant 0 : index
    %44 = vector.load %arg9[%c0_43, %c2_44, %c0_45, %c0_46] : memref<1x4x16x8xf32, #tpu.memory_space<vmem>>, vector<1x1x16x8xf32>
    %45 = vector.shape_cast %44 : vector<1x1x16x8xf32> to vector<16x8xf32>
    %46 = vector.shape_cast %43 : vector<16x8xf32> to vector<1x1x16x8xf32>
    tpu.vector_store %arg9[%c0_43, %c2_44, %c0_45, %c0_46], %46 {strides = array<i32>} : memref<1x4x16x8xf32, #tpu.memory_space<vmem>>, vector<1x1x16x8xf32>,
    %47 = vector.extract_strided_slice %4 {offsets = [0, 24], sizes = [16, 8], strides = [1, 1]} : vector<16x32xf32> to vector<16x8xf32>
    %c0_47 = arith.constant 0 : index
    %c3 = arith.constant 3 : index
    %c0_48 = arith.constant 0 : index
    %c0_49 = arith.constant 0 : index
    %48 = vector.load %arg7[%c0_47, %c3, %c0_48, %c0_49] : memref<1x4x16x8xf32, #tpu.memory_space<vmem>>, vector<1x1x16x8xf32>
    %49 = vector.shape_cast %48 : vector<1x1x16x8xf32> to vector<16x8xf32>
    %50 = vector.shape_cast %47 : vector<16x8xf32> to vector<1x1x16x8xf32>
    tpu.vector_store %arg7[%c0_47, %c3, %c0_48, %c0_49], %50 {strides = array<i32>} : memref<1x4x16x8xf32, #tpu.memory_space<vmem>>, vector<1x1x16x8xf32>,
    %51 = vector.extract_strided_slice %7 {offsets = [0, 24], sizes = [16, 8], strides = [1, 1]} : vector<16x32xf32> to vector<16x8xf32>
    %c0_50 = arith.constant 0 : index
    %c3_51 = arith.constant 3 : index
    %c0_52 = arith.constant 0 : index
    %c0_53 = arith.constant 0 : index
    %52 = vector.load %arg8[%c0_50, %c3_51, %c0_52, %c0_53] : memref<1x4x16x8xf32, #tpu.memory_space<vmem>>, vector<1x1x16x8xf32>
    %53 = vector.shape_cast %52 : vector<1x1x16x8xf32> to vector<16x8xf32>
    %54 = vector.shape_cast %51 : vector<16x8xf32> to vector<1x1x16x8xf32>
    tpu.vector_store %arg8[%c0_50, %c3_51, %c0_52, %c0_53], %54 {strides = array<i32>} : memref<1x4x16x8xf32, #tpu.memory_space<vmem>>, vector<1x1x16x8xf32>,
    %55 = vector.extract_strided_slice %10 {offsets = [0, 24], sizes = [16, 8], strides = [1, 1]} : vector<16x32xf32> to vector<16x8xf32>
    %c0_54 = arith.constant 0 : index
    %c3_55 = arith.constant 3 : index
    %c0_56 = arith.constant 0 : index
    %c0_57 = arith.constant 0 : index
    %56 = vector.load %arg9[%c0_54, %c3_55, %c0_56, %c0_57] : memref<1x4x16x8xf32, #tpu.memory_space<vmem>>, vector<1x1x16x8xf32>
    %57 = vector.shape_cast %56 : vector<1x1x16x8xf32> to vector<16x8xf32>
    %58 = vector.shape_cast %55 : vector<16x8xf32> to vector<1x1x16x8xf32>
    tpu.vector_store %arg9[%c0_54, %c3_55, %c0_56, %c0_57], %58 {strides = array<i32>} : memref<1x4x16x8xf32, #tpu.memory_space<vmem>>, vector<1x1x16x8xf32>,
    return
  }
  func.func @transform_0(%arg0: i32, %arg1: i32, %arg2: i32) -> (i32, i32, i32) {
    %c0_i32 = arith.constant 0 : i32
    %c0_i32_0 = arith.constant 0 : i32
    return %arg0, %arg2, %c0_i32 : i32, i32, i32
  }
  func.func @transform_1(%arg0: i32, %arg1: i32, %arg2: i32) -> (i32, i32, i32) {
    %c0_i32 = arith.constant 0 : i32
    %c0_i32_0 = arith.constant 0 : i32
    %c0_i32_1 = arith.constant 0 : i32
    return %arg1, %c0_i32, %c0_i32_0 : i32, i32, i32
  }
  func.func @transform_2(%arg0: i32, %arg1: i32, %arg2: i32) -> (i32, i32, i32) {
    %c0_i32 = arith.constant 0 : i32
    %c0_i32_0 = arith.constant 0 : i32
    %c0_i32_1 = arith.constant 0 : i32
    return %arg1, %c0_i32, %c0_i32_0 : i32, i32, i32
  }
  func.func @transform_3(%arg0: i32, %arg1: i32, %arg2: i32) -> (i32, i32, i32) {
    %c0_i32 = arith.constant 0 : i32
    %c0_i32_0 = arith.constant 0 : i32
    %c0_i32_1 = arith.constant 0 : i32
    return %arg1, %c0_i32, %c0_i32_0 : i32, i32, i32
  }
  func.func @transform_4(%arg0: i32, %arg1: i32, %arg2: i32) -> (i32, i32, i32, i32) {
    %c0_i32 = arith.constant 0 : i32
    %c0_i32_0 = arith.constant 0 : i32
    return %arg0, %arg1, %arg2, %c0_i32 : i32, i32, i32, i32
  }
  func.func @transform_5(%arg0: i32, %arg1: i32, %arg2: i32) -> (i32, i32, i32, i32) {
    %c0_i32 = arith.constant 0 : i32
    %c0_i32_0 = arith.constant 0 : i32
    return %arg0, %arg1, %arg2, %c0_i32 : i32, i32, i32, i32
  }
  func.func @transform_6(%arg0: i32, %arg1: i32, %arg2: i32) -> (i32, i32, i32, i32) {
    %c0_i32 = arith.constant 0 : i32
    %c0_i32_0 = arith.constant 0 : i32
    return %arg0, %arg1, %arg2, %c0_i32 : i32, i32, i32, i32
  }
}

</mosaic_0001>

<llo_original>
// kernel: tpu_custom_call.1
$region0: #{tpu_custom_call.1}
  #allocation0 [shape = 'u32[]', space=smem, size = 0x4, offset = 0x4, fixed_abs, tag = 'smem constant byte address 0x4 - core index']
  #allocation1 [shape = 'u32[144,128]{1,0:T(1,128)}', space=vmem, size = 0x12000, scoped, tag = 'internal scratch']
  %s0 = inlined_call_operand.hbm [shape: f32[2,16,32], index: 0, kind: input, shape index: {}]
  %s1 = inlined_call_operand.hbm [shape: f32[1,32,32], index: 1, kind: input, shape index: {}]
  %s2 = inlined_call_operand.hbm [shape: f32[1,32,32], index: 2, kind: input, shape index: {}]
  %s3 = inlined_call_operand.hbm [shape: f32[1,32,32], index: 3, kind: input, shape index: {}]
  %s4 = inlined_call_operand.hbm [shape: f32[2,4,16,8], index: 4, kind: output, shape index: {0}]
  %s5 = inlined_call_operand.hbm [shape: f32[2,4,16,8], index: 5, kind: output, shape index: {1}]
  %s6 = inlined_call_operand.hbm [shape: f32[2,4,16,8], index: 6, kind: output, shape index: {2}]
  %7 = xla_tuple %s4, %s5, %s6
  %s8 = sld [smem:[#allocation0]]
  $region81: #{tpu_custom_call.1} parent=0
    _
  %s10 = ssub.s32 1, %s8
  %s11 = scalar_select 0, %s10, %s8
  $region1: #{tpu_custom_call.1} parent=0
    #allocation2 [shape = 'u8[16384]{0}', space=vmem, size = 0x4000, scoped, tag = 'input window, operand 0']
    #allocation3 [shape = 's32[2]{0}', space=sflag, size = 0x8, scoped, tag = 'scoped memory for tpu_custom_call.1']
    #allocation4 [shape = 's32[2]{0}', space=sflag, size = 0x8, scoped, tag = 'scoped memory for tpu_custom_call.1']
    #allocation5 [shape = 'u8[16384]{0}', space=vmem, size = 0x4000, scoped, tag = 'input window, operand 1, single buffered']
    #allocation6 [shape = 's32[1]{0}', space=sflag, size = 0x4, scoped, tag = 'scoped memory for tpu_custom_call.1']
    #allocation7 [shape = 'u8[16384]{0}', space=vmem, size = 0x4000, scoped, tag = 'input window, operand 2, single buffered']
    #allocation8 [shape = 'u8[16384]{0}', space=vmem, size = 0x4000, scoped, tag = 'input window, operand 3, single buffered']
    #allocation9 [shape = 's32[1]{0}', space=sflag, size = 0x4, scoped, tag = 'scoped memory for tpu_custom_call.1']
    #allocation10 [shape = 'u8[65536]{0}', space=vmem, size = 0x10000, scoped, tag = 'output window, operand 0']
    #allocation11 [shape = 'u8[65536]{0}', space=vmem, size = 0x10000, scoped, tag = 'output window, operand 1']
    #allocation12 [shape = 's32[2]{0}', space=sflag, size = 0x8, scoped, tag = 'scoped memory for tpu_custom_call.1']
    #allocation13 [shape = 'u8[65536]{0}', space=vmem, size = 0x10000, scoped, tag = 'output window, operand 2']
    %12 = vsyncpa [#allocation3], 0
    %s13 = scalar_lea.sflag [#allocation3], 1
    %14 = vsyncpa %s13, 0
    %15 = vsyncpa [#allocation6], 0
    %16 = vsyncpa [#allocation9], 0
    %17 = vsyncpa [#allocation4], 0
    %s18 = scalar_lea.sflag [#allocation4], 1
    %19 = vsyncpa %s18, 0
    %20 = vsyncpa [#allocation12], 0
    %s21 = scalar_lea.sflag [#allocation12], 1
    %22 = vsyncpa %s21, 0
    loop: start=0, step=1, limit=4
    $region2: #{tpu_custom_call.1} parent=1 // loop_pre_header
      _
    $region3: #{tpu_custom_call.1} parent=1 // loop_header
      %s24 = sphi 0, %s28
      %p25 = scmp.ge.s32.totalorder %s24, 4
      %s31 = sphi 0, %s50
      %s32 = sphi 0, %s46
      %s33 = sphi 0, %s42
      %s34 = sphi 0, %s31
      %s35 = sphi 0, %s32
      %s36 = sphi 0, %s33
      %s37 = sphi 0, %s34
      %s38 = sphi 0, %s35
      %s39 = sphi 0, %s36
      %s55 = sphi 0, %s57
      %s58 = sphi 0, %s55
      %s59 = sphi 0, %s58
      %s75 = sphi 0, %s59
      %s81 = sphi 0, %s83
      %s84 = sphi 0, %s81
      %s85 = sphi 0, %s84
      %s101 = sphi 0, %s85
      %s107 = sphi 0, %s109
      %s110 = sphi 0, %s107
      %s111 = sphi 0, %s110
      %s127 = sphi 0, %s111
      %s133 = sphi 0, %s135
      %s136 = sphi 0, %s133
      %s137 = sphi 0, %s136
      %s153 = sphi 0, %s137
      %s163 = sphi 0, %s165
      %s166 = sphi 0, %s163
      %s167 = sphi 0, %s166
      %s183 = sphi 0, %s167
      %s193 = sphi 0, %s195
      %s196 = sphi 0, %s193
      %s197 = sphi 0, %s196
      %s213 = sphi 0, %s197
      %s223 = sphi 0, %s225
      %s226 = sphi 0, %s223
      %s227 = sphi 0, %s226
      %s243 = sphi 0, %s227
    $region4: #{tpu_custom_call.1} parent=1 // loop_header_branch
      %27 = sbr.rel (%p25) target = $region8
    $region5: #{tpu_custom_call.1} parent=1 // loop_body
      %s29 = ssub.s32 %s24, 1
      %s30 = ssub.s32 %s24, 2
      %s40 = sadd.s32 1, %s33
      %p41 = scmp.ge.s32.totalorder %s40, 1
      %s42 = scalar_select %p41, 0, %s40
      %s43 = sadd.s32 1, %s32
      %s44 = scalar_select %p41, %s43, %s32
      %p45 = scmp.ge.s32.totalorder %s44, 1
      %s46 = scalar_select %p45, 0, %s44
      %s47 = sadd.s32 1, %s31
      %s48 = scalar_select %p45, %s47, %s31
      %p49 = scmp.ge.s32.totalorder %s48, 2
      %s50 = scalar_select %p49, 0, %s48
      %s51 = ssub.s32 %s31, %s50
      %s52 = ssub.s32 %s33, %s42
      %s53 = sor.u32 %s51, %s52
      %p54 = scmp.eq.s32.totalorder %s53, 0
      %s56 = sadd.s32 %s55, 1
      %s57 = scalar_select %p54, %s55, %s56
      %p60 = pneg %p54
      %p61 = scmp.eq.s32.totalorder %s24, 1
      %p62 = por %p60, %p61
      %p63 = scmp.ne.s32.totalorder %s55, %s58
      %p64 = scmp.eq.s32.totalorder %s24, 0
      %p65 = por %p63, %p64
      %p66 = scmp.ne.s32.totalorder %s55, %s58
      %p67 = scmp.eq.s32.totalorder %s29, 1
      %p68 = por %p66, %p67
      %p69 = scmp.ne.s32.totalorder %s58, %s59
      %p70 = scmp.eq.s32.totalorder %s29, 0
      %p71 = por %p69, %p70
      %p72 = scmp.ne.s32.totalorder %s58, %s59
      %p73 = scmp.eq.s32.totalorder %s30, 1
      %p74 = por %p72, %p73
      %p76 = scmp.ne.s32.totalorder %s59, %s75
      %p77 = scmp.eq.s32.totalorder %s30, 0
      %p78 = por %p76, %p77
      %s79 = ssub.s32 %s32, %s46
      %p80 = scmp.eq.s32.totalorder %s79, 0
      %s82 = sadd.s32 %s81, 1
      %s83 = scalar_select %p80, %s81, %s82
      %p86 = pneg %p80
      %p87 = scmp.eq.s32.totalorder %s24, 1
      %p88 = por %p86, %p87
      %p89 = scmp.ne.s32.totalorder %s81, %s84
      %p90 = scmp.eq.s32.totalorder %s24, 0
      %p91 = por %p89, %p90
      %p92 = scmp.ne.s32.totalorder %s81, %s84
      %p93 = scmp.eq.s32.totalorder %s29, 1
      %p94 = por %p92, %p93
      %p95 = scmp.ne.s32.totalorder %s84, %s85
      %p96 = scmp.eq.s32.totalorder %s29, 0
      %p97 = por %p95, %p96
      %p98 = scmp.ne.s32.totalorder %s84, %s85
      %p99 = scmp.eq.s32.totalorder %s30, 1
      %p100 = por %p98, %p99
      %p102 = scmp.ne.s32.totalorder %s85, %s101
      %p103 = scmp.eq.s32.totalorder %s30, 0
      %p104 = por %p102, %p103
      %s105 = ssub.s32 %s32, %s46
      %p106 = scmp.eq.s32.totalorder %s105, 0
      %s108 = sadd.s32 %s107, 1
      %s109 = scalar_select %p106, %s107, %s108
      %p112 = pneg %p106
      %p113 = scmp.eq.s32.totalorder %s24, 1
      %p114 = por %p112, %p113
      %p115 = scmp.ne.s32.totalorder %s107, %s110
      %p116 = scmp.eq.s32.totalorder %s24, 0
      %p117 = por %p115, %p116
      %p118 = scmp.ne.s32.totalorder %s107, %s110
      %p119 = scmp.eq.s32.totalorder %s29, 1
      %p120 = por %p118, %p119
      %p121 = scmp.ne.s32.totalorder %s110, %s111
      %p122 = scmp.eq.s32.totalorder %s29, 0
      %p123 = por %p121, %p122
      %p124 = scmp.ne.s32.totalorder %s110, %s111
      %p125 = scmp.eq.s32.totalorder %s30, 1
      %p126 = por %p124, %p125
      %p128 = scmp.ne.s32.totalorder %s111, %s127
      %p129 = scmp.eq.s32.totalorder %s30, 0
      %p130 = por %p128, %p129
      %s131 = ssub.s32 %s32, %s46
      %p132 = scmp.eq.s32.totalorder %s131, 0
      %s134 = sadd.s32 %s133, 1
      %s135 = scalar_select %p132, %s133, %s134
      %p138 = pneg %p132
      %p139 = scmp.eq.s32.totalorder %s24, 1
      %p140 = por %p138, %p139
      %p141 = scmp.ne.s32.totalorder %s133, %s136
      %p142 = scmp.eq.s32.totalorder %s24, 0
      %p143 = por %p141, %p142
      %p144 = scmp.ne.s32.totalorder %s133, %s136
      %p145 = scmp.eq.s32.totalorder %s29, 1
      %p146 = por %p144, %p145
      %p147 = scmp.ne.s32.totalorder %s136, %s137
      %p148 = scmp.eq.s32.totalorder %s29, 0
      %p149 = por %p147, %p148
      %p150 = scmp.ne.s32.totalorder %s136, %s137
      %p151 = scmp.eq.s32.totalorder %s30, 1
      %p152 = por %p150, %p151
      %p154 = scmp.ne.s32.totalorder %s137, %s153
      %p155 = scmp.eq.s32.totalorder %s30, 0
      %p156 = por %p154, %p155
      %s157 = ssub.s32 %s31, %s50
      %s158 = ssub.s32 %s32, %s46
      %s159 = sor.u32 %s157, %s158
      %s160 = ssub.s32 %s33, %s42
      %s161 = sor.u32 %s159, %s160
      %p162 = scmp.eq.s32.totalorder %s161, 0
      %s164 = sadd.s32 %s163, 1
      %s165 = scalar_select %p162, %s163, %s164
      %p168 = pneg %p162
      %p169 = scmp.eq.s32.totalorder %s24, 1
      %p170 = por %p168, %p169
      %p171 = scmp.ne.s32.totalorder %s163, %s166
      %p172 = scmp.eq.s32.totalorder %s24, 0
      %p173 = por %p171, %p172
      %p174 = scmp.ne.s32.totalorder %s163, %s166
      %p175 = scmp.eq.s32.totalorder %s29, 1
      %p176 = por %p174, %p175
      %p177 = scmp.ne.s32.totalorder %s166, %s167
      %p178 = scmp.eq.s32.totalorder %s29, 0
      %p179 = por %p177, %p178
      %p180 = scmp.ne.s32.totalorder %s166, %s167
      %p181 = scmp.eq.s32.totalorder %s30, 1
      %p182 = por %p180, %p181
      %p184 = scmp.ne.s32.totalorder %s167, %s183
      %p185 = scmp.eq.s32.totalorder %s30, 0
      %p186 = por %p184, %p185
      %s187 = ssub.s32 %s31, %s50
      %s188 = ssub.s32 %s32, %s46
      %s189 = sor.u32 %s187, %s188
      %s190 = ssub.s32 %s33, %s42
      %s191 = sor.u32 %s189, %s190
      %p192 = scmp.eq.s32.totalorder %s191, 0
      %s194 = sadd.s32 %s193, 1
      %s195 = scalar_select %p192, %s193, %s194
      %p198 = pneg %p192
      %p199 = scmp.eq.s32.totalorder %s24, 1
      %p200 = por %p198, %p199
      %p201 = scmp.ne.s32.totalorder %s193, %s196
      %p202 = scmp.eq.s32.totalorder %s24, 0
      %p203 = por %p201, %p202
      %p204 = scmp.ne.s32.totalorder %s193, %s196
      %p205 = scmp.eq.s32.totalorder %s29, 1
      %p206 = por %p204, %p205
      %p207 = scmp.ne.s32.totalorder %s196, %s197
      %p208 = scmp.eq.s32.totalorder %s29, 0
      %p209 = por %p207, %p208
      %p210 = scmp.ne.s32.totalorder %s196, %s197
      %p211 = scmp.eq.s32.totalorder %s30, 1
      %p212 = por %p210, %p211
      %p214 = scmp.ne.s32.totalorder %s197, %s213
      %p215 = scmp.eq.s32.totalorder %s30, 0
      %p216 = por %p214, %p215
      %s217 = ssub.s32 %s31, %s50
      %s218 = ssub.s32 %s32, %s46
      %s219 = sor.u32 %s217, %s218
      %s220 = ssub.s32 %s33, %s42
      %s221 = sor.u32 %s219, %s220
      %p222 = scmp.eq.s32.totalorder %s221, 0
      %s224 = sadd.s32 %s223, 1
      %s225 = scalar_select %p222, %s223, %s224
      %p228 = pneg %p222
      %p229 = scmp.eq.s32.totalorder %s24, 1
      %p230 = por %p228, %p229
      %p231 = scmp.ne.s32.totalorder %s223, %s226
      %p232 = scmp.eq.s32.totalorder %s24, 0
      %p233 = por %p231, %p232
      %p234 = scmp.ne.s32.totalorder %s223, %s226
      %p235 = scmp.eq.s32.totalorder %s29, 1
      %p236 = por %p234, %p235
      %p237 = scmp.ne.s32.totalorder %s226, %s227
      %p238 = scmp.eq.s32.totalorder %s29, 0
      %p239 = por %p237, %p238
      %p240 = scmp.ne.s32.totalorder %s226, %s227
      %p241 = scmp.eq.s32.totalorder %s30, 1
      %p242 = por %p240, %p241
      %p244 = scmp.ne.s32.totalorder %s227, %s243
      %p245 = scmp.eq.s32.totalorder %s30, 0
      %p246 = por %p244, %p245
      %p247 = scmp.le.s32.totalorder 1, %s24
      %p248 = scmp.lt.s32.totalorder %s24, 3
      %p249 = pnand %p247, %p248
      %p250 = pneg %p249
      // Predicated region
      $region9: #{tpu_custom_call.1} parent=5 // pred_check
        _
      $region10: #{tpu_custom_call.1} parent=5 // pred_check_branch
        %252 = sbr.rel (%p249) target = $region12
      $region11: #{tpu_custom_call.1} parent=5 // pred_region
        %s253 = ssub.s32 %s24, 1
        // Predicated region
        $region13: #{tpu_custom_call.1} parent=11 // pred_check
          %p254 = pneg %p97
        $region14: #{tpu_custom_call.1} parent=11 // pred_check_branch
          %256 = sbr.rel (%p254) target = $region16
        $region15: #{tpu_custom_call.1} parent=11 // pred_region
          %s258 = ssub.s32 512, 512
          %259 = vsyncadd [#allocation6], %s258
          %s260 = smul.addr %s35, 4
          %s261 = smul.addr %s260, 128
          %s262 = scalar_lea.hbm %s1, %s261
          %s263 = sshll.u32 [#allocation5], 4
          %s264 = int_to_ptr.vmem [resolvable:$true] %s263
          %269 = dma.hbm_to_vmem [thread:$0]  %s262, 512, %s264, [#allocation6], 128, 128, 8
        $region16: #{tpu_custom_call.1} parent=11 // pred_fallthru
          _
        // Predicated region
        $region17: #{tpu_custom_call.1} parent=11 // pred_check
          %p270 = pneg %p123
        $region18: #{tpu_custom_call.1} parent=11 // pred_check_branch
          %272 = sbr.rel (%p270) target = $region20
        $region19: #{tpu_custom_call.1} parent=11 // pred_region
          %s274 = ssub.s32 512, 512
          %275 = vsyncadd [#allocation6], %s274
          %s276 = smul.addr %s35, 4
          %s277 = smul.addr %s276, 128
          %s278 = scalar_lea.hbm %s2, %s277
          %s279 = sshll.u32 [#allocation7], 4
          %s280 = int_to_ptr.vmem [resolvable:$true] %s279
          %285 = dma.hbm_to_vmem [thread:$0]  %s278, 512, %s280, [#allocation6], 128, 128, 8
        $region20: #{tpu_custom_call.1} parent=11 // pred_fallthru
          _
        // Predicated region
        $region21: #{tpu_custom_call.1} parent=11 // pred_check
          %p286 = pneg %p149
        $region22: #{tpu_custom_call.1} parent=11 // pred_check_branch
          %288 = sbr.rel (%p286) target = $region24
        $region23: #{tpu_custom_call.1} parent=11 // pred_region
          %s290 = ssub.s32 512, 512
          %291 = vsyncadd [#allocation9], %s290
          %s292 = smul.addr %s35, 4
          %s293 = smul.addr %s292, 128
          %s294 = scalar_lea.hbm %s3, %s293
          %s295 = sshll.u32 [#allocation8], 4
          %s296 = int_to_ptr.vmem [resolvable:$true] %s295
          %301 = dma.hbm_to_vmem [thread:$0]  %s294, 512, %s296, [#allocation9], 128, 128, 8
        $region24: #{tpu_custom_call.1} parent=11 // pred_fallthru
          _
      $region12: #{tpu_custom_call.1} parent=5 // pred_fallthru
        _
      %p302 = scmp.lt.s32.totalorder %s24, 2
      // Predicated region
      $region25: #{tpu_custom_call.1} parent=5 // pred_check
        %p303 = pneg %p302
      $region26: #{tpu_custom_call.1} parent=5 // pred_check_branch
        %305 = sbr.rel (%p303) target = $region28
      $region27: #{tpu_custom_call.1} parent=5 // pred_region
        // Predicated region
        $region29: #{tpu_custom_call.1} parent=27 // pred_check
          %p306 = pneg %p65
        $region30: #{tpu_custom_call.1} parent=27 // pred_check_branch
          %308 = sbr.rel (%p306) target = $region32
        $region31: #{tpu_custom_call.1} parent=27 // pred_region
          %s309 = sand.u32 %s55, 1
          %s310 = scalar_lea.sflag [#allocation3], %s309
          %s311 = sand.u32 %s55, 1
          %s312 = smul.addr %s311, 16
          %s313 = scalar_lea.vmem [#allocation2], %s312
          %s314 = smul.u32 2, %s33
          %s316 = ssub.s32 256, 256
          %317 = vsyncadd %s310, %s316
          %s318 = smul.addr %s31, 2
          %s319 = sadd.s32 %s314, %s318
          %s320 = smul.addr %s319, 128
          %s321 = scalar_lea.hbm %s0, %s320
          %s322 = sshll.u32 %s313, 4
          %s323 = int_to_ptr.vmem [resolvable:$true] %s322
          %328 = dma.hbm_to_vmem [thread:$0]  %s321, 256, %s323, %s310, 128, 128, 8
        $region32: #{tpu_custom_call.1} parent=27 // pred_fallthru
          _
      $region28: #{tpu_custom_call.1} parent=5 // pred_fallthru
        _
      %p329 = scmp.le.s32.totalorder 1, %s24
      %p330 = scmp.lt.s32.totalorder %s24, 3
      %p331 = pnand %p329, %p330
      %p332 = pneg %p331
      // Predicated region
      $region33: #{tpu_custom_call.1} parent=5 // pred_check
        _
      $region34: #{tpu_custom_call.1} parent=5 // pred_check_branch
        %334 = sbr.rel (%p331) target = $region36
      $region35: #{tpu_custom_call.1} parent=5 // pred_region
        %s335 = ssub.s32 %s24, 1
        %s336 = sand.u32 %s58, 1
        %s337 = scalar_lea.sflag [#allocation3], %s336
        %s338 = sand.u32 %s58, 1
        %s339 = smul.addr %s338, 16
        %s340 = scalar_lea.vmem [#allocation2], %s339
        // Predicated region
        $region37: #{tpu_custom_call.1} parent=35 // pred_check
          %p341 = pneg %p71
        $region38: #{tpu_custom_call.1} parent=35 // pred_check_branch
          %343 = sbr.rel (%p341) target = $region40
        $region39: #{tpu_custom_call.1} parent=35 // pred_region
          %344 = dma.done %s337, 256
        $region40: #{tpu_custom_call.1} parent=35 // pred_fallthru
          _
        // Predicated region
        $region41: #{tpu_custom_call.1} parent=35 // pred_check
          %p345 = pneg %p97
        $region42: #{tpu_custom_call.1} parent=35 // pred_check_branch
          %347 = sbr.rel (%p345) target = $region44
        $region43: #{tpu_custom_call.1} parent=35 // pred_region
          %348 = dma.done [#allocation6], 512
        $region44: #{tpu_custom_call.1} parent=35 // pred_fallthru
          _
        // Predicated region
        $region45: #{tpu_custom_call.1} parent=35 // pred_check
          %p349 = pneg %p123
        $region46: #{tpu_custom_call.1} parent=35 // pred_check_branch
          %351 = sbr.rel (%p349) target = $region48
        $region47: #{tpu_custom_call.1} parent=35 // pred_region
          %352 = dma.done [#allocation6], 512
        $region48: #{tpu_custom_call.1} parent=35 // pred_fallthru
          _
        // Predicated region
        $region49: #{tpu_custom_call.1} parent=35 // pred_check
          %p353 = pneg %p149
        $region50: #{tpu_custom_call.1} parent=35 // pred_check_branch
          %355 = sbr.rel (%p353) target = $region52
        $region51: #{tpu_custom_call.1} parent=35 // pred_region
          %356 = dma.done [#allocation9], 512
        $region52: #{tpu_custom_call.1} parent=35 // pred_fallthru
          _
        %s357 = sand.u32 %s58, 1
        %s358 = scalar_lea.sflag [#allocation3], %s357
        %s359 = sand.u32 %s58, 1
        %s360 = smul.addr %s359, 16
        %s361 = scalar_lea.vmem [#allocation2], %s360
        %p362 = pneg %p71
        %p363 = pneg %p68
        %p364 = pneg %p97
        %p365 = pneg %p94
        %p366 = pneg %p123
        %p367 = pneg %p120
        %p368 = pneg %p149
        %p369 = pneg %p146
        %p370 = pneg %p179
        %p371 = pneg %p176
        %s372 = sand.u32 %s166, 1
        %s373 = scalar_lea.sflag [#allocation4], %s372
        %s374 = sand.u32 %s166, 1
        %s375 = smul.addr %s374, 64
        %s376 = scalar_lea.vmem [#allocation10], %s375
        %p377 = pneg %p209
        %p378 = pneg %p206
        %s379 = sand.u32 %s29, 1
        %s380 = scalar_lea.sflag [#allocation12], %s379
        %s381 = sand.u32 %s196, 1
        %s382 = smul.addr %s381, 64
        %s383 = scalar_lea.vmem [#allocation11], %s382
        %p384 = pneg %p239
        %p385 = pneg %p236
        %s386 = sand.u32 %s29, 1
        %s387 = scalar_lea.sflag [#allocation12], %s386
        %s388 = sand.u32 %s226, 1
        %s389 = smul.addr %s388, 64
        %s390 = scalar_lea.vmem [#allocation13], %s389
        %s391 = smul.u32 2, %s36
        %s392 = smul.u32 4, %s35
        %s393 = smul.u32 2, %s36
        %s394 = smul.u32 4, %s35
        %s395 = smul.u32 2, %s36
        %s396 = smul.u32 4, %s35
        %s397 = smul.u32 2, %s36
        %v398 = vld [vmem:[%s340] sm:$0xff]
        %v399 = vld [vmem:[%s340 + $0x8] sm:$0xff]
        %v400 = vld [vmem:[#allocation5] sm:$0xff]
        %v401 = vld [vmem:[#allocation5 + $0x8] sm:$0xff]
        %v402 = vld [vmem:[#allocation5 + $0x10] sm:$0xff]
        %v403 = vld [vmem:[#allocation5 + $0x18] sm:$0xff]
        %vm404 = vcmask 261120
        %v406 = vsel %vm404, %v398, 0
        %v409 = vsel %vm404, %v399, 0
        %411 = vmatprep.subr.mxu0 0.0
        %412 = vmatpush1.msra.mxu0 %v400
        %413 = vmatprep.subr.mxu0 0.0
        %414 = vmatpush1.msra.mxu0 %v401
        %415 = vmatprep.subr.mxu0 0.0
        %416 = vmatpush1.msra.mxu0 %v402
        %417 = vmatprep.subr.mxu0 0.0
        %418 = vmatpush1.msra.mxu0 %v403
        %419 = vmatprep.subr.mxu0 0.0
        %420 = vmatpush1.msra.mxu0 0.0
        %421 = vmatprep.subr.mxu0 0.0
        %422 = vmatpush1.msra.mxu0 0.0
        %423 = vmatprep.subr.mxu0 0.0
        %424 = vmatpush1.msra.mxu0 0.0
        %425 = vmatprep.subr.mxu0 0.0
        %426 = vmatpush1.msra.mxu0 0.0
        %427 = vmatprep.subr.mxu0 0.0
        %428 = vmatpush1.msra.mxu0 0.0
        %429 = vmatprep.subr.mxu0 0.0
        %430 = vmatpush1.msra.mxu0 0.0
        %431 = vmatprep.subr.mxu0 0.0
        %432 = vmatpush1.msra.mxu0 0.0
        %433 = vmatprep.subr.mxu0 0.0
        %434 = vmatpush1.msra.mxu0 0.0
        %435 = vmatprep.subr.mxu0 0.0
        %436 = vmatpush1.msra.mxu0 0.0
        %437 = vmatprep.subr.mxu0 0.0
        %438 = vmatpush1.msra.mxu0 0.0
        %439 = vmatprep.subr.mxu0 0.0
        %440 = vmatpush1.msra.mxu0 0.0
        %441 = vmatprep.subr.mxu0 0.0
        %442 = vmatpush1.msra.mxu0 0.0
        %443 = vmatprep.subr.mxu0 0.0
        %444 = vmatpush1.msra.mxu0 0.0
        %445 = vmatprep.subr.mxu0 0.0
        %446 = vmatpush1.msra.mxu0 0.0
        %447 = vmatprep.subr.mxu0 0.0
        %448 = vmatpush1.msra.mxu0 0.0
        %449 = vmatprep.subr.mxu0 0.0
        %450 = vmatpush1.msra.mxu0 0.0
        %451 = vmatprep.subr.mxu0 0.0
        %452 = vmatpush1.msra.mxu0 0.0
        %453 = vmatprep.subr.mxu0 0.0
        %454 = vmatpush1.msra.mxu0 0.0
        %455 = vmatprep.subr.mxu0 0.0
        %456 = vmatpush1.msra.mxu0 0.0
        %457 = vmatprep.subr.mxu0 0.0
        %458 = vmatpush1.msra.mxu0 0.0
        %459 = vmatprep.subr.mxu0 0.0
        %460 = vmatpush1.msra.mxu0 0.0
        %461 = vmatprep.subr.mxu0 0.0
        %462 = vmatpush1.msra.mxu0 0.0
        %463 = vmatprep.subr.mxu0 0.0
        %464 = vmatpush1.msra.mxu0 0.0
        %465 = vmatprep.subr.mxu0 0.0
        %466 = vmatpush1.msra.mxu0 0.0
        %467 = vmatprep.subr.mxu0 0.0
        %468 = vmatpush1.msra.mxu0 0.0
        %469 = vmatprep.subr.mxu0 0.0
        %470 = vmatpush1.msra.mxu0 0.0
        %471 = vmatprep.subr.mxu0 0.0
        %472 = vmatpush1.msra.mxu0 0.0
        %473 = vmatprep.subr.mxu0 0.0
        %474 = vmatpush1.msra.mxu0 0.0
        %475 = vmatprep.mubr.f32.mxu0 0.0
        %476 = vmatmul.mubr.f32.gmra.mrb[0].mxu0 %v406
        %v477 = vpop.f32.mrb[0].mxu0
        %v478 = vadd.f32 0.0, %v477
        %v479 = vpop.f32.mrb[0].mxu0
        %480 = vmatprep.mubr.f32.mxu0 0.0
        %481 = vmatmul.mubr.f32.gmra.mrb[0].mxu0 %v409
        %v482 = vpop.f32.mrb[0].mxu0
        %v483 = vadd.f32 0.0, %v482
        %v484 = vpop.f32.mrb[0].mxu0
        %485 = vdwg.mxu0
        %v486 = vld [vmem:[#allocation7] sm:$0xff]
        %v487 = vld [vmem:[#allocation7 + $0x8] sm:$0xff]
        %v488 = vld [vmem:[#allocation7 + $0x10] sm:$0xff]
        %v489 = vld [vmem:[#allocation7 + $0x18] sm:$0xff]
        %490 = vmatprep.subr.mxu0 0.0
        %491 = vmatpush1.msra.mxu0 %v486
        %492 = vmatprep.subr.mxu0 0.0
        %493 = vmatpush1.msra.mxu0 %v487
        %494 = vmatprep.subr.mxu0 0.0
        %495 = vmatpush1.msra.mxu0 %v488
        %496 = vmatprep.subr.mxu0 0.0
        %497 = vmatpush1.msra.mxu0 %v489
        %498 = vmatprep.subr.mxu0 0.0
        %499 = vmatpush1.msra.mxu0 0.0
        %500 = vmatprep.subr.mxu0 0.0
        %501 = vmatpush1.msra.mxu0 0.0
        %502 = vmatprep.subr.mxu0 0.0
        %503 = vmatpush1.msra.mxu0 0.0
        %504 = vmatprep.subr.mxu0 0.0
        %505 = vmatpush1.msra.mxu0 0.0
        %506 = vmatprep.subr.mxu0 0.0
        %507 = vmatpush1.msra.mxu0 0.0
        %508 = vmatprep.subr.mxu0 0.0
        %509 = vmatpush1.msra.mxu0 0.0
        %510 = vmatprep.subr.mxu0 0.0
        %511 = vmatpush1.msra.mxu0 0.0
        %512 = vmatprep.subr.mxu0 0.0
        %513 = vmatpush1.msra.mxu0 0.0
        %514 = vmatprep.subr.mxu0 0.0
        %515 = vmatpush1.msra.mxu0 0.0
        %516 = vmatprep.subr.mxu0 0.0
        %517 = vmatpush1.msra.mxu0 0.0
        %518 = vmatprep.subr.mxu0 0.0
        %519 = vmatpush1.msra.mxu0 0.0
        %520 = vmatprep.subr.mxu0 0.0
        %521 = vmatpush1.msra.mxu0 0.0
        %522 = vmatprep.subr.mxu0 0.0
        %523 = vmatpush1.msra.mxu0 0.0
        %524 = vmatprep.subr.mxu0 0.0
        %525 = vmatpush1.msra.mxu0 0.0
        %526 = vmatprep.subr.mxu0 0.0
        %527 = vmatpush1.msra.mxu0 0.0
        %528 = vmatprep.subr.mxu0 0.0
        %529 = vmatpush1.msra.mxu0 0.0
        %530 = vmatprep.subr.mxu0 0.0
        %531 = vmatpush1.msra.mxu0 0.0
        %532 = vmatprep.subr.mxu0 0.0
        %533 = vmatpush1.msra.mxu0 0.0
        %534 = vmatprep.subr.mxu0 0.0
        %535 = vmatpush1.msra.mxu0 0.0
        %536 = vmatprep.subr.mxu0 0.0
        %537 = vmatpush1.msra.mxu0 0.0
        %538 = vmatprep.subr.mxu0 0.0
        %539 = vmatpush1.msra.mxu0 0.0
        %540 = vmatprep.subr.mxu0 0.0
        %541 = vmatpush1.msra.mxu0 0.0
        %542 = vmatprep.subr.mxu0 0.0
        %543 = vmatpush1.msra.mxu0 0.0
        %544 = vmatprep.subr.mxu0 0.0
        %545 = vmatpush1.msra.mxu0 0.0
        %546 = vmatprep.subr.mxu0 0.0
        %547 = vmatpush1.msra.mxu0 0.0
        %548 = vmatprep.subr.mxu0 0.0
        %549 = vmatpush1.msra.mxu0 0.0
        %550 = vmatprep.subr.mxu0 0.0
        %551 = vmatpush1.msra.mxu0 0.0
        %552 = vmatprep.subr.mxu0 0.0
        %553 = vmatpush1.msra.mxu0 0.0
        %554 = vmatprep.mubr.f32.mxu0 0.0
        %555 = vmatmul.mubr.f32.gmra.mrb[0].mxu0 %v406
        %v556 = vpop.f32.mrb[0].mxu0
        %v557 = vadd.f32 0.0, %v556
        %v558 = vpop.f32.mrb[0].mxu0
        %559 = vmatprep.mubr.f32.mxu0 0.0
        %560 = vmatmul.mubr.f32.gmra.mrb[0].mxu0 %v409
        %v561 = vpop.f32.mrb[0].mxu0
        %v562 = vadd.f32 0.0, %v561
        %v563 = vpop.f32.mrb[0].mxu0
        %564 = vdwg.mxu0
        %v565 = vld [vmem:[#allocation8] sm:$0xff]
        %v566 = vld [vmem:[#allocation8 + $0x8] sm:$0xff]
        %v567 = vld [vmem:[#allocation8 + $0x10] sm:$0xff]
        %v568 = vld [vmem:[#allocation8 + $0x18] sm:$0xff]
        %569 = vmatprep.subr.mxu0 0.0
        %570 = vmatpush1.msra.mxu0 %v565
        %571 = vmatprep.subr.mxu0 0.0
        %572 = vmatpush1.msra.mxu0 %v566
        %573 = vmatprep.subr.mxu0 0.0
        %574 = vmatpush1.msra.mxu0 %v567
        %575 = vmatprep.subr.mxu0 0.0
        %576 = vmatpush1.msra.mxu0 %v568
        %577 = vmatprep.subr.mxu0 0.0
        %578 = vmatpush1.msra.mxu0 0.0
        %579 = vmatprep.subr.mxu0 0.0
        %580 = vmatpush1.msra.mxu0 0.0
        %581 = vmatprep.subr.mxu0 0.0
        %582 = vmatpush1.msra.mxu0 0.0
        %583 = vmatprep.subr.mxu0 0.0
        %584 = vmatpush1.msra.mxu0 0.0
        %585 = vmatprep.subr.mxu0 0.0
        %586 = vmatpush1.msra.mxu0 0.0
        %587 = vmatprep.subr.mxu0 0.0
        %588 = vmatpush1.msra.mxu0 0.0
        %589 = vmatprep.subr.mxu0 0.0
        %590 = vmatpush1.msra.mxu0 0.0
        %591 = vmatprep.subr.mxu0 0.0
        %592 = vmatpush1.msra.mxu0 0.0
        %593 = vmatprep.subr.mxu0 0.0
        %594 = vmatpush1.msra.mxu0 0.0
        %595 = vmatprep.subr.mxu0 0.0
        %596 = vmatpush1.msra.mxu0 0.0
        %597 = vmatprep.subr.mxu0 0.0
        %598 = vmatpush1.msra.mxu0 0.0
        %599 = vmatprep.subr.mxu0 0.0
        %600 = vmatpush1.msra.mxu0 0.0
        %601 = vmatprep.subr.mxu0 0.0
        %602 = vmatpush1.msra.mxu0 0.0
        %603 = vmatprep.subr.mxu0 0.0
        %604 = vmatpush1.msra.mxu0 0.0
        %605 = vmatprep.subr.mxu0 0.0
        %606 = vmatpush1.msra.mxu0 0.0
        %607 = vmatprep.subr.mxu0 0.0
        %608 = vmatpush1.msra.mxu0 0.0
        %609 = vmatprep.subr.mxu0 0.0
        %610 = vmatpush1.msra.mxu0 0.0
        %611 = vmatprep.subr.mxu0 0.0
        %612 = vmatpush1.msra.mxu0 0.0
        %613 = vmatprep.subr.mxu0 0.0
        %614 = vmatpush1.msra.mxu0 0.0
        %615 = vmatprep.subr.mxu0 0.0
        %616 = vmatpush1.msra.mxu0 0.0
        %617 = vmatprep.subr.mxu0 0.0
        %618 = vmatpush1.msra.mxu0 0.0
        %619 = vmatprep.subr.mxu0 0.0
        %620 = vmatpush1.msra.mxu0 0.0
        %621 = vmatprep.subr.mxu0 0.0
        %622 = vmatpush1.msra.mxu0 0.0
        %623 = vmatprep.subr.mxu0 0.0
        %624 = vmatpush1.msra.mxu0 0.0
        %625 = vmatprep.subr.mxu0 0.0
        %626 = vmatpush1.msra.mxu0 0.0
        %627 = vmatprep.subr.mxu0 0.0
        %628 = vmatpush1.msra.mxu0 0.0
        %629 = vmatprep.subr.mxu0 0.0
        %630 = vmatpush1.msra.mxu0 0.0
        %631 = vmatprep.subr.mxu0 0.0
        %632 = vmatpush1.msra.mxu0 0.0
        %633 = vmatprep.mubr.f32.mxu0 0.0
        %634 = vmatmul.mubr.f32.gmra.mrb[0].mxu0 %v406
        %v635 = vpop.f32.mrb[0].mxu0
        %v636 = vadd.f32 0.0, %v635
        %v637 = vpop.f32.mrb[0].mxu0
        %638 = vmatprep.mubr.f32.mxu0 0.0
        %639 = vmatmul.mubr.f32.gmra.mrb[0].mxu0 %v409
        %v640 = vpop.f32.mrb[0].mxu0
        %v641 = vadd.f32 0.0, %v640
        %v642 = vpop.f32.mrb[0].mxu0
        %643 = vdwg.mxu0
        %vm644 = vcmask 64512
        %645 = vst.msk [vmem:[%s376] sm:$0xff] %vm644, %v478
        %646 = vst.msk [vmem:[%s376 + $0x8] sm:$0xff] %vm644, %v483
        %647 = vst.msk [vmem:[%s383] sm:$0xff] %vm644, %v557
        %648 = vst.msk [vmem:[%s383 + $0x8] sm:$0xff] %vm644, %v562
        %649 = vst.msk [vmem:[%s390] sm:$0xff] %vm644, %v636
        %650 = vst.msk [vmem:[%s390 + $0x8] sm:$0xff] %vm644, %v641
        %653 = vrot.lane.b32.xlu0 %v478, 120
        %v654 = vpop.permute.xlu0 %653
        %655 = vrot.lane.b32.xlu0 %v483, 120
        %v656 = vpop.permute.xlu0 %655
        %s659 = scalar_lea.vmem %s376, 16 [#allocation10]
        %660 = vst.msk [vmem:[%s659] sm:$0xff] %vm644, %v654
        %661 = vst.msk [vmem:[%s659 + $0x8] sm:$0xff] %vm644, %v656
        %664 = vrot.lane.b32.xlu0 %v557, 120
        %v665 = vpop.permute.xlu0 %664
        %666 = vrot.lane.b32.xlu0 %v562, 120
        %v667 = vpop.permute.xlu0 %666
        %s670 = scalar_lea.vmem %s383, 16 [#allocation11]
        %671 = vst.msk [vmem:[%s670] sm:$0xff] %vm644, %v665
        %672 = vst.msk [vmem:[%s670 + $0x8] sm:$0xff] %vm644, %v667
        %675 = vrot.lane.b32.xlu0 %v636, 120
        %v676 = vpop.permute.xlu0 %675
        %677 = vrot.lane.b32.xlu0 %v641, 120
        %v678 = vpop.permute.xlu0 %677
        %s681 = scalar_lea.vmem %s390, 16 [#allocation13]
        %682 = vst.msk [vmem:[%s681] sm:$0xff] %vm644, %v676
        %683 = vst.msk [vmem:[%s681 + $0x8] sm:$0xff] %vm644, %v678
        %684 = vrot.lane.b32.xlu0 %v478, 112
        %v685 = vpop.permute.xlu0 %684
        %686 = vrot.lane.b32.xlu0 %v483, 112
        %v687 = vpop.permute.xlu0 %686
        %s690 = scalar_lea.vmem %s376, 32 [#allocation10]
        %691 = vst.msk [vmem:[%s690] sm:$0xff] %vm644, %v685
        %692 = vst.msk [vmem:[%s690 + $0x8] sm:$0xff] %vm644, %v687
        %693 = vrot.lane.b32.xlu0 %v557, 112
        %v694 = vpop.permute.xlu0 %693
        %695 = vrot.lane.b32.xlu0 %v562, 112
        %v696 = vpop.permute.xlu0 %695
        %s699 = scalar_lea.vmem %s383, 32 [#allocation11]
        %700 = vst.msk [vmem:[%s699] sm:$0xff] %vm644, %v694
        %701 = vst.msk [vmem:[%s699 + $0x8] sm:$0xff] %vm644, %v696
        %702 = vrot.lane.b32.xlu0 %v636, 112
        %v703 = vpop.permute.xlu0 %702
        %704 = vrot.lane.b32.xlu0 %v641, 112
        %v705 = vpop.permute.xlu0 %704
        %s708 = scalar_lea.vmem %s390, 32 [#allocation13]
        %709 = vst.msk [vmem:[%s708] sm:$0xff] %vm644, %v703
        %710 = vst.msk [vmem:[%s708 + $0x8] sm:$0xff] %vm644, %v705
        %711 = vrot.lane.b32.xlu0 %v478, 104
        %v712 = vpop.permute.xlu0 %711
        %713 = vrot.lane.b32.xlu0 %v483, 104
        %v714 = vpop.permute.xlu0 %713
        %s717 = scalar_lea.vmem %s376, 48 [#allocation10]
        %718 = vst.msk [vmem:[%s717] sm:$0xff] %vm644, %v712
        %719 = vst.msk [vmem:[%s717 + $0x8] sm:$0xff] %vm644, %v714
        %720 = vrot.lane.b32.xlu0 %v557, 104
        %v721 = vpop.permute.xlu0 %720
        %722 = vrot.lane.b32.xlu0 %v562, 104
        %v723 = vpop.permute.xlu0 %722
        %s726 = scalar_lea.vmem %s383, 48 [#allocation11]
        %727 = vst.msk [vmem:[%s726] sm:$0xff] %vm644, %v721
        %728 = vst.msk [vmem:[%s726 + $0x8] sm:$0xff] %vm644, %v723
        %729 = vrot.lane.b32.xlu0 %v636, 104
        %v730 = vpop.permute.xlu0 %729
        %731 = vrot.lane.b32.xlu0 %v641, 104
        %v732 = vpop.permute.xlu0 %731
        %s735 = scalar_lea.vmem %s390, 48 [#allocation13]
        %736 = vst.msk [vmem:[%s735] sm:$0xff] %vm644, %v730
        %737 = vst.msk [vmem:[%s735 + $0x8] sm:$0xff] %vm644, %v732
        %s738 = sand.u32 %s166, 1
        %s739 = scalar_lea.sflag [#allocation4], %s738
        %s740 = sand.u32 %s166, 1
        %s741 = smul.addr %s740, 64
        %s742 = scalar_lea.vmem [#allocation10], %s741
        %s743 = sand.u32 %s29, 1
        %s744 = scalar_lea.sflag [#allocation12], %s743
        %s745 = sand.u32 %s196, 1
        %s746 = smul.addr %s745, 64
        %s747 = scalar_lea.vmem [#allocation11], %s746
        %s748 = sand.u32 %s29, 1
        %s749 = scalar_lea.sflag [#allocation12], %s748
        %s750 = sand.u32 %s226, 1
        %s751 = smul.addr %s750, 64
        %s752 = scalar_lea.vmem [#allocation13], %s751
        // Predicated region
        $region53: #{tpu_custom_call.1} parent=35 // pred_check
          %p753 = pneg %p176
        $region54: #{tpu_custom_call.1} parent=35 // pred_check_branch
          %755 = sbr.rel (%p753) target = $region56
        $region55: #{tpu_custom_call.1} parent=35 // pred_region
          %s756 = smul.u32 4, %s35
          %s757 = smul.u32 2, %s36
          %s759 = ssub.s32 1024, 1024
          %760 = vsyncadd %s739, %s759
          %s761 = smul.addr %s756, 2
          %s762 = sadd.s32 %s757, %s761
          %s763 = smul.addr %s34, 8
          %s764 = sadd.s32 %s762, %s763
          %s765 = smul.addr %s764, 128
          %s766 = scalar_lea.hbm %s4, %s765
          %s767 = sshll.u32 %s742, 4
          %s768 = int_to_ptr.vmem [resolvable:$true] %s767
          %773 = dma.vmem_to_hbm [thread:$0]  %s768, 1024, %s766, %s739, 128, 128, 8
        $region56: #{tpu_custom_call.1} parent=35 // pred_fallthru
          _
        // Predicated region
        $region57: #{tpu_custom_call.1} parent=35 // pred_check
          %p774 = pneg %p206
        $region58: #{tpu_custom_call.1} parent=35 // pred_check_branch
          %776 = sbr.rel (%p774) target = $region60
        $region59: #{tpu_custom_call.1} parent=35 // pred_region
          %s777 = smul.u32 4, %s35
          %s778 = smul.u32 2, %s36
          %s780 = ssub.s32 1024, 1024
          %781 = vsyncadd %s744, %s780
          %s782 = smul.addr %s777, 2
          %s783 = sadd.s32 %s778, %s782
          %s784 = smul.addr %s34, 8
          %s785 = sadd.s32 %s783, %s784
          %s786 = smul.addr %s785, 128
          %s787 = scalar_lea.hbm %s5, %s786
          %s788 = sshll.u32 %s747, 4
          %s789 = int_to_ptr.vmem [resolvable:$true] %s788
          %794 = dma.vmem_to_hbm [thread:$0]  %s789, 1024, %s787, %s744, 128, 128, 8
        $region60: #{tpu_custom_call.1} parent=35 // pred_fallthru
          _
        // Predicated region
        $region61: #{tpu_custom_call.1} parent=35 // pred_check
          %p795 = pneg %p236
        $region62: #{tpu_custom_call.1} parent=35 // pred_check_branch
          %797 = sbr.rel (%p795) target = $region64
        $region63: #{tpu_custom_call.1} parent=35 // pred_region
          %s798 = smul.u32 4, %s35
          %s799 = smul.u32 2, %s36
          %s801 = ssub.s32 1024, 1024
          %802 = vsyncadd %s749, %s801
          %s803 = smul.addr %s798, 2
          %s804 = sadd.s32 %s799, %s803
          %s805 = smul.addr %s34, 8
          %s806 = sadd.s32 %s804, %s805
          %s807 = smul.addr %s806, 128
          %s808 = scalar_lea.hbm %s6, %s807
          %s809 = sshll.u32 %s752, 4
          %s810 = int_to_ptr.vmem [resolvable:$true] %s809
          %815 = dma.vmem_to_hbm [thread:$0]  %s810, 1024, %s808, %s749, 128, 128, 8
        $region64: #{tpu_custom_call.1} parent=35 // pred_fallthru
          _
      $region36: #{tpu_custom_call.1} parent=5 // pred_fallthru
        _
      %p816 = scmp.le.s32.totalorder 2, %s24
      // Predicated region
      $region65: #{tpu_custom_call.1} parent=5 // pred_check
        %p817 = pneg %p816
      $region66: #{tpu_custom_call.1} parent=5 // pred_check_branch
        %819 = sbr.rel (%p817) target = $region68
      $region67: #{tpu_custom_call.1} parent=5 // pred_region
        %s820 = ssub.s32 %s24, 2
        // Predicated region
        $region69: #{tpu_custom_call.1} parent=67 // pred_check
          %p821 = pneg %p182
        $region70: #{tpu_custom_call.1} parent=67 // pred_check_branch
          %823 = sbr.rel (%p821) target = $region72
        $region71: #{tpu_custom_call.1} parent=67 // pred_region
          %s824 = sand.u32 %s167, 1
          %s825 = scalar_lea.sflag [#allocation4], %s824
          %s826 = sand.u32 %s167, 1
          %s827 = smul.addr %s826, 64
          %s828 = scalar_lea.vmem [#allocation10], %s827
          %829 = dma.done %s825, 1024
        $region72: #{tpu_custom_call.1} parent=67 // pred_fallthru
          _
        // Predicated region
        $region73: #{tpu_custom_call.1} parent=67 // pred_check
          %p830 = pneg %p212
        $region74: #{tpu_custom_call.1} parent=67 // pred_check_branch
          %832 = sbr.rel (%p830) target = $region76
        $region75: #{tpu_custom_call.1} parent=67 // pred_region
          %s833 = sand.u32 %s30, 1
          %s834 = scalar_lea.sflag [#allocation12], %s833
          %s835 = sand.u32 %s197, 1
          %s836 = smul.addr %s835, 64
          %s837 = scalar_lea.vmem [#allocation11], %s836
          %838 = dma.done %s834, 1024
        $region76: #{tpu_custom_call.1} parent=67 // pred_fallthru
          _
        // Predicated region
        $region77: #{tpu_custom_call.1} parent=67 // pred_check
          %p839 = pneg %p242
        $region78: #{tpu_custom_call.1} parent=67 // pred_check_branch
          %841 = sbr.rel (%p839) target = $region80
        $region79: #{tpu_custom_call.1} parent=67 // pred_region
          %s842 = sand.u32 %s30, 1
          %s843 = scalar_lea.sflag [#allocation12], %s842
          %s844 = sand.u32 %s227, 1
          %s845 = smul.addr %s844, 64
          %s846 = scalar_lea.vmem [#allocation13], %s845
          %847 = dma.done %s843, 1024
        $region80: #{tpu_custom_call.1} parent=67 // pred_fallthru
          _
      $region68: #{tpu_custom_call.1} parent=5 // pred_fallthru
        _
    $region6: #{tpu_custom_call.1} parent=1 // loop_footer
      %s28 = sadd.s32 1, %s24
    $region7: #{tpu_custom_call.1} parent=1 // loop_footer_branch
      %23 = sbr.rel target = $region3
    $region8: #{tpu_custom_call.1} parent=1 // loop_exit
      _
    %848 = vsyncpa [#allocation3], 1
    %s849 = scalar_lea.sflag [#allocation3], 1
    %850 = vsyncpa %s849, 1
    %851 = vsyncpa [#allocation6], 1
    %852 = vsyncpa [#allocation9], 1
    %853 = vsyncpa [#allocation4], 1
    %s854 = scalar_lea.sflag [#allocation4], 1
    %855 = vsyncpa %s854, 1
    %856 = vsyncpa [#allocation12], 1
    %s857 = scalar_lea.sflag [#allocation12], 1
    %858 = vsyncpa %s857, 1

</llo_original>
